<compile_context>
chip_gen: v5e
topology: v5e:2x2
jax: 0.10.0
libtpu: 0.0.40
codegen_flags: <defaults>
</compile_context>

<pallas_src>
import math

import jax
import jax.numpy as jnp
from jax.experimental import pallas as pl
from jax.experimental.pallas import tpu as pltpu

F32 = jnp.float32
BF16 = jnp.bfloat16

# detectron2 default pixel statistics (pixel_mean / pixel_std buffers)
PIXEL_MEAN = (123.675, 116.28, 103.53)
PIXEL_STD = (58.395, 57.12, 57.375)

NEG_BIG = -1e30


def _default_vmem_limit():
    """~3/4 of physical VMEM: ~96 MiB on v5e/v6e (128 MiB), ~48 MiB on v7x (64 MiB)."""
    cap = 128 * 1024 * 1024
    try:
        info = pltpu.get_tpu_info()
        cap = int(getattr(info, "vmem_capacity_bytes", cap))
    except Exception:
        pass
    return max(32 * 1024 * 1024, min((cap * 3) // 4, 100 * 1024 * 1024))


_VMEM_LIMIT = _default_vmem_limit()


def _pick_exp_dtype():
    """bf16 exp (EUP) on v6e/v7x; f32 on older generations (no bf16 EUP)."""
    try:
        kind = jax.devices()[0].device_kind.lower()
    except Exception:
        return F32
    if any(s in kind for s in ("v2", "v3", "v4", "v5")):
        return F32
    return BF16


_EXP_DTYPE = _pick_exp_dtype()


def _cparams(sems):
    return pltpu.CompilerParams(
        dimension_semantics=tuple(sems),
        vmem_limit_bytes=_VMEM_LIMIT,
    )


def _round_up(n, m=128):
    return ((n + m - 1) // m) * m


def _pad_last(x, target):
    n = x.shape[-1]
    if n == target:
        return x
    pad = [(0, 0)] * (x.ndim - 1) + [(0, target - n)]
    return jnp.pad(x, pad)


def _pick_tile(n, max_tile):
    """Largest tile <= max_tile dividing n that is a multiple of 128 (n itself if small)."""
    if n <= max_tile:
        return n
    t = (max_tile // 128) * 128
    while t >= 128:
        if n % t == 0:
            return t
        t -= 128
    return min(n, 128)


def _fuse_tile(C, hw_p):
    """HW tile for the fuse kernel from a ~24 MiB VMEM budget (fits v7x's limit)."""
    budget = 24 * 1024 * 1024
    max_t = (budget // (24 * C)) // 128 * 128   # ~24 B/elem across double-buffered blocks
    max_t = max(128, min(4096, max_t))
    return _pick_tile(hw_p, max_t)


# ----------------------------------------------------------------------------
# Pixel normalization kernel:  (x - mean) * inv_std   per channel
# ----------------------------------------------------------------------------
def _normalize_kernel(x_ref, mean_ref, inv_std_ref, o_ref):
    # (3, tile) tile, lane-dense; (3, 1) stats broadcast along lanes.
    o_ref[0] = (x_ref[0] - mean_ref[...]) * inv_std_ref[...]


def normalize_image(x):
    B, C, H, W = x.shape
    HW = H * W
    hw_p = _round_up(HW)
    xf = _pad_last(x.reshape(B, C, HW).astype(F32), hw_p)
    mean = jnp.array(PIXEL_MEAN, F32).reshape(C, 1)
    inv_std = (1.0 / jnp.array(PIXEL_STD, F32)).reshape(C, 1)
    t = _pick_tile(hw_p, 8192)
    out = pl.pallas_call(
        _normalize_kernel,
        grid=(B, hw_p // t),
        in_specs=[
            pl.BlockSpec((1, C, t), lambda b, i: (b, 0, i)),
            pl.BlockSpec((C, 1), lambda b, i: (0, 0)),
            pl.BlockSpec((C, 1), lambda b, i: (0, 0)),
        ],
        out_specs=pl.BlockSpec((1, C, t), lambda b, i: (b, 0, i)),
        out_shape=jax.ShapeDtypeStruct((B, C, hw_p), F32),
        compiler_params=_cparams(("parallel", "parallel")),
    )(xf, mean, inv_std)
    return out[:, :, :HW].reshape(B, C, H, W)


# ----------------------------------------------------------------------------
# CrossAttention kernels
# ----------------------------------------------------------------------------
def _kv_proj_kernel(x2_ref, w_ref, b_ref, o_ref):
    """Stacked K/V projection: (2C, C) @ (C, tile) + bias, bf16 out (lane-dense)."""
    x2 = x2_ref[0].astype(BF16)                                              # (C, t)
    kv = jnp.dot(w_ref[...], x2, preferred_element_type=F32) + b_ref[...]    # (2C, t)
    o_ref[0] = kv.astype(BF16)


def _make_attn_kernel(hw_valid, tkv, need_mask, exp_dtype):
    """Flash-style attention step for one (image, head, q_tile, kv_tile)."""

    def kernel(x1_ref, wq_ref, bq_ref, k_ref, v_ref, o_ref,
               q_sc, m_sc, l_sc, acc_sc):
        kt = pl.program_id(3)

        @pl.when(kt == 0)
        def _():
            # q projection once per query tile (scale/sqrt(hd) folded into wq/bq).
            x1 = x1_ref[0].astype(BF16)                                      # (C, tq)
            q = jnp.dot(wq_ref[0], x1, preferred_element_type=F32) + bq_ref[0]
            q_sc[...] = q.astype(BF16)                                       # (hd, tq)
            m_sc[...] = jnp.full(m_sc.shape, NEG_BIG, m_sc.dtype)
            l_sc[...] = jnp.zeros(l_sc.shape, l_sc.dtype)
            acc_sc[...] = jnp.zeros(acc_sc.shape, acc_sc.dtype)

        k = k_ref[0]                                                         # (hd, tkv) bf16
        v = v_ref[0]                                                         # (hd, tkv) bf16
        # scores^T: (tkv, tq) = K^T Q  (contract head_dim); softmax over axis 0.
        s = jax.lax.dot_general(k, q_sc[...], (((0,), (0,)), ((), ())),
                                preferred_element_type=F32)
        if need_mask:
            row = jax.lax.broadcasted_iota(jnp.int32, (s.shape[0], 1), 0) + kt * tkv
            s = jnp.where(row < hw_valid, s, NEG_BIG)

        m_new = jnp.maximum(m_sc[...], jnp.max(s, axis=0, keepdims=True))    # (1, tq)
        alpha = jnp.exp(m_sc[...] - m_new)                                   # (1, tq)
        p = jnp.exp((s - m_new).astype(exp_dtype))                           # (tkv, tq)
        l_sc[...] = alpha * l_sc[...] + jnp.sum(p, axis=0, keepdims=True, dtype=F32)
        pv = jax.lax.dot_general(v, p.astype(BF16), (((1,), (0,)), ((), ())),
                                 preferred_element_type=F32)                 # (hd, tq)
        acc_sc[...] = acc_sc[...] * alpha + pv
        m_sc[...] = m_new

        @pl.when(kt == pl.num_programs(3) - 1)
        def _():
            inv_l = pl.reciprocal(l_sc[...], approx=True)                    # (1, tq)
            # context^T (hd, tq): lane dim tq is a multiple of 128 -> unmasked stores.
            o_ref[0, 0] = (acc_sc[...] * inv_l).astype(BF16)

    return kernel


def _fuse_kernel(ctx_ref, ca_ref, x1_ref, o_ref):
    # context * channel_att + x1   (lane-dense, tiled over HW, f32 accumulate)
    o_ref[0] = ctx_ref[0].astype(F32) * ca_ref[0] + x1_ref[0]


def cross_attention(x1, x2, p):
    """CrossAttention.forward(x1, x2).  x1, x2: (B, C, H, W) float32 NCHW."""
    B, C, H, W = x1.shape
    HW = H * W
    hw_p = _round_up(HW)
    nh = p["num_heads"]
    hd = C // nh

    x1f = x1.reshape(B, C, HW).astype(F32)
    x2f = x2.reshape(B, C, HW).astype(F32)
    x1p = _pad_last(x1f, hw_p)
    x2p = _pad_last(x2f, hw_p)

    # Fold the learned per-head softmax scale and 1/sqrt(hd) into the query
    # projection rows belonging to each head.
    head_scale = p["scale"].reshape(nh, 1, 1) / math.sqrt(hd)
    wq = (p["wq"].reshape(nh, hd, C) * head_scale).astype(BF16)              # (nh, hd, C)
    bq = (p["bq"].reshape(nh, hd, 1) * head_scale).astype(F32)               # (nh, hd, 1)
    # Stacked K/V weights: one (2C, C) matmul instead of separate hd-row matmuls.
    w_kv = jnp.concatenate([p["wk"], p["wv"]], axis=0).astype(BF16)          # (2C, C)
    b_kv = jnp.concatenate([p["bk"], p["bv"]], axis=0).astype(F32)           # (2C, 1)

    # ---- Stage 1: K/V projection (computed once per image, bf16 lane-dense) ----
    tp = _pick_tile(hw_p, 512)
    kv = pl.pallas_call(
        _kv_proj_kernel,
        grid=(B, hw_p // tp),
        in_specs=[
            pl.BlockSpec((1, C, tp), lambda b, t: (b, 0, t)),
            pl.BlockSpec((2 * C, C), lambda b, t: (0, 0)),
            pl.BlockSpec((2 * C, 1), lambda b, t: (0, 0)),
        ],
        out_specs=pl.BlockSpec((1, 2 * C, tp), lambda b, t: (b, 0, t)),
        out_shape=jax.ShapeDtypeStruct((B, 2 * C, hw_p), BF16),
        compiler_params=_cparams(("parallel", "parallel")),
    )(x2p, w_kv, b_kv)

    # ---- Stage 2: flash-style attention (KV-tiled online softmax) ----
    tq = _pick_tile(hw_p, 256)
    tkv = _pick_tile(hw_p, 512)
    nqt = hw_p // tq
    nkt = hw_p // tkv
    attn_kernel = _make_attn_kernel(HW, tkv, hw_p != HW, _EXP_DTYPE)

    ctx_t = pl.pallas_call(
        attn_kernel,
        grid=(B, nh, nqt, nkt),
        in_specs=[
            pl.BlockSpec((1, C, tq), lambda b, h, qt, kt: (b, 0, qt)),
            pl.BlockSpec((1, hd, C), lambda b, h, qt, kt: (h, 0, 0)),
            pl.BlockSpec((1, hd, 1), lambda b, h, qt, kt: (h, 0, 0)),
            # K rows of head h, V rows of head h (row blocks of the stacked kv array).
            pl.BlockSpec((1, hd, tkv), lambda b, h, qt, kt: (b, h, kt)),
            pl.BlockSpec((1, hd, tkv), lambda b, h, qt, kt: (b, nh + h, kt)),
        ],
        out_specs=pl.BlockSpec((1, 1, hd, tq), lambda b, h, qt, kt: (b, h, 0, qt)),
        out_shape=jax.ShapeDtypeStruct((B, nh, hd, hw_p), BF16),
        scratch_shapes=[
            pltpu.VMEM((hd, tq), BF16),   # q tile (projected once per query tile)
            pltpu.VMEM((1, tq), F32),     # running max
            pltpu.VMEM((1, tq), F32),     # running denominator
            pltpu.VMEM((hd, tq), F32),    # context^T accumulator
        ],
        compiler_params=_cparams(("parallel", "parallel", "arbitrary", "arbitrary")),
    )(x1p, wq, bq, kv, kv)

    # TODO(synk): torch does context.view(B, C, H, W) on the contiguous
    # (B, nh, HW, hd) matmul output — a raw row-major reinterpretation that
    # interleaves query positions into the channel axis.  Faithfully reproduced
    # here as an XLA transpose+reshape of the lane-dense kernel output.
    ctx = jnp.swapaxes(ctx_t[:, :, :, :HW], 2, 3).reshape(B, C, HW)          # bf16

    # Channel-attention SE branch: two N=1 matmuls, batched over B in plain JAX
    # (kept out of the attention kernel's critical path).
    pooled = jnp.mean(x1f, axis=-1)                                          # (B, C)
    h1 = jnp.maximum(pooled @ p["ca_w1"].T + p["ca_b1"].reshape(-1), 0.0)    # (B, C//8)
    ch_att = jax.nn.sigmoid(h1 @ p["ca_w2"].T + p["ca_b2"].reshape(-1))      # (B, C)
    ch_att = ch_att.reshape(B, C, 1).astype(F32)

    # ---- Stage 3: gating + residual fuse (lane-dense, VMEM-budgeted tile) ----
    ctx_p = _pad_last(ctx, hw_p)
    thw = _fuse_tile(C, hw_p)
    out = pl.pallas_call(
        _fuse_kernel,
        grid=(B, hw_p // thw),
        in_specs=[
            pl.BlockSpec((1, C, thw), lambda b, t: (b, 0, t)),
            pl.BlockSpec((1, C, 1), lambda b, t: (b, 0, 0)),
            pl.BlockSpec((1, C, thw), lambda b, t: (b, 0, t)),
        ],
        out_specs=pl.BlockSpec((1, C, thw), lambda b, t: (b, 0, t)),
        out_shape=jax.ShapeDtypeStruct((B, C, hw_p), F32),
        compiler_params=_cparams(("parallel", "parallel")),
    )(ctx_p, ch_att, x1p)
    return out[:, :, :HW].reshape(B, C, H, W)


# ----------------------------------------------------------------------------
# semantic_inference: einsum('qc,qhw->chw', softmax(cls)[:, :-1], sigmoid(masks))
# ----------------------------------------------------------------------------
def _sem_inf_kernel(cls_ref, pred_ref, o_ref):
    masks = jax.nn.sigmoid(pred_ref[0].astype(F32)).astype(BF16)             # (Q, t)
    o_ref[0] = jax.lax.dot_general(cls_ref[0], masks, (((0,), (0,)), ((), ())),
                                   preferred_element_type=F32)               # (K, t)


def semantic_inference(mask_cls, mask_pred):
    B, Q, Kp1 = mask_cls.shape
    _, _, H, W = mask_pred.shape
    K = Kp1 - 1
    HW = H * W
    hw_p = _round_up(HW)
    # Class softmax hoisted out of the per-HW-tile loop (tiny (Q, K+1) op).
    probs = jax.nn.softmax(mask_cls.astype(F32), axis=-1)[..., :K].astype(BF16)
    mp = _pad_last(mask_pred.reshape(B, Q, HW).astype(BF16), hw_p)
    t = _pick_tile(hw_p, 2048)
    out = pl.pallas_call(
        _sem_inf_kernel,
        grid=(B, hw_p // t),
        in_specs=[
            pl.BlockSpec((1, Q, K), lambda b, i: (b, 0, 0)),
            pl.BlockSpec((1, Q, t), lambda b, i: (b, 0, i)),
        ],
        out_specs=pl.BlockSpec((1, K, t), lambda b, i: (b, 0, i)),
        out_shape=jax.ShapeDtypeStruct((B, K, hw_p), F32),
        compiler_params=_cparams(("parallel", "parallel")),
    )(probs, mp)
    return out[:, :, :HW].reshape(B, K, H, W)


# ----------------------------------------------------------------------------
# Parameter init (deterministic, matching the module's __init__ shapes)
# ----------------------------------------------------------------------------
def init_cross_attention_params(key, C, num_heads=2):
    ks = jax.random.split(key, 5)
    C8 = C // 8

    def kaiming(k, shape):  # kaiming_normal_, mode='fan_out', 1x1 conv
        return jax.random.normal(k, shape, F32) * math.sqrt(2.0 / shape[0])

    return dict(
        num_heads=num_heads,
        wq=kaiming(ks[0], (C, C)), bq=jnp.zeros((C, 1), F32),
        wk=kaiming(ks[1], (C, C)), bk=jnp.zeros((C, 1), F32),
        wv=kaiming(ks[2], (C, C)), bv=jnp.zeros((C, 1), F32),
        scale=jnp.ones((1, num_heads), F32),
        ca_w1=kaiming(ks[3], (C8, C)), ca_b1=jnp.zeros((C8, 1), F32),
        ca_w2=kaiming(ks[4], (C, C8)), ca_b2=jnp.zeros((C, 1), F32),
    )


BACKBONE_SPEC = (("res2", 4, 96), ("res3", 8, 192), ("res4", 16, 384), ("res5", 32, 768))


def init_backbone_params(key):
    ks = jax.random.split(key, len(BACKBONE_SPEC))
    return {name: jax.random.normal(k, (c, 3), F32) * 0.1
            for k, (name, _, c) in zip(ks, BACKBONE_SPEC)}


def backbone(x, params):
    # TODO(synk): the real detectron2 backbone (Swin/ResNet) is an external
    # registry module; stand-in = strided average pooling + per-level 1x1
    # channel projection producing res2..res5 with the expected channel counts.
    B, C, H, W = x.shape
    feats = {}
    for name, s, _ in BACKBONE_SPEC:
        pooled = x.reshape(B, C, H // s, s, W // s, s).mean(axis=(3, 5))
        f = jnp.einsum("oc,bchw->bohw", params[name], pooled)
        feats[name] = jnp.tanh(f)
    return feats


def init_head_params(key, num_queries, num_classes):
    k1, k2 = jax.random.split(key)
    return dict(
        w_cls=jax.random.normal(k1, (num_queries, num_classes + 1, 768), F32) * 0.05,
        q_embed=jax.random.normal(k2, (num_queries, 96), F32) * 0.1,
    )


def sem_seg_head(features, params):
    # TODO(synk): MaskFormer sem_seg_head (pixel decoder + transformer decoder)
    # is an external module; stand-in produces pred_logits / pred_masks with the
    # same shapes/contract consumed by the inference path.
    pooled = features["res5"].mean(axis=(2, 3))                         # (B, 768)
    pred_logits = jnp.einsum("bc,qkc->bqk", pooled, params["w_cls"])    # (B, Q, K+1)
    pred_masks = jnp.einsum("qc,bchw->bqhw", params["q_embed"], features["res2"])
    return {"pred_logits": pred_logits, "pred_masks": pred_masks}


# ----------------------------------------------------------------------------
# MaskFormer.forward (inference path, semantic_on=True)
# ----------------------------------------------------------------------------
def maskformer_forward(image, image_add, params):
    imgs = normalize_image(image)
    imgs_add = normalize_image(image_add)
    # NOTE: the module sets self.backbone_add = backbone (shared weights).
    f1 = backbone(imgs, params["backbone"])
    f2 = backbone(imgs_add, params["backbone"])
    out3 = cross_attention(f2["res3"], f1["res3"], params["ca_res3"])
    out4 = cross_attention(f2["res4"], f1["res4"], params["ca_res4"])
    out5 = cross_attention(f2["res5"], f1["res5"], params["ca_res5"])
    features_sum = {"res2": f1["res2"], "res3": out3, "res4": out4, "res5": out5}
    outputs = sem_seg_head(features_sum, params["head"])

    mask_cls = outputs["pred_logits"]                    # (B, Q, K+1)
    mask_pred = outputs["pred_masks"]                    # (B, Q, h, w)
    B, Q = mask_pred.shape[:2]
    H, W = image.shape[-2:]
    # TODO(synk): F.interpolate(..., mode='bilinear', align_corners=False) kept
    # as jax.image.resize (no clean Pallas equivalent for bilinear resampling).
    mask_pred = jax.image.resize(mask_pred, (B, Q, H, W), method="bilinear")
    # semantic_inference only (panoptic/instance inference are data-dependent
    # Python loops over detections and are not translated).
    return semantic_inference(mask_cls, mask_pred)       # (B, num_classes, H, W)


if __name__ == "__main__":
    key = jax.random.PRNGKey(0)
    kimg, kimg2, kb, kh, k3, k4, k5 = jax.random.split(key, 7)

    B = 2
    H = W = 64
    num_queries, num_classes = 8, 4

    image = jax.random.uniform(kimg, (B, 3, H, W), F32) * 255.0
    image_add = jax.random.uniform(kimg2, (B, 3, H, W), F32) * 255.0

    params = dict(
        backbone=init_backbone_params(kb),
        head=init_head_params(kh, num_queries, num_classes),
        # cross_attention_res2 exists in __init__ but is unused in forward.
        ca_res3=init_cross_attention_params(k3, 192),
        ca_res4=init_cross_attention_params(k4, 384),
        ca_res5=init_cross_attention_params(k5, 768),
    )

    out = maskformer_forward(image, image_add, params)
    jax.block_until_ready(out)
    assert out.shape == (B, num_classes, H, W), out.shape
    assert bool(jnp.all(jnp.isfinite(out)))
    print("KERNEL_OK")
</pallas_src>

<mosaic_0001>
module attributes {stable_mosaic.version = 11 : i64} {
  func.func @_normalize_kernel(%arg0: i32, %arg1: i32, %arg2: memref<1x3x4096xf32, #tpu.memory_space<vmem>>, %arg3: memref<3x1xf32, #tpu.memory_space<vmem>>, %arg4: memref<3x1xf32, #tpu.memory_space<vmem>>, %arg5: memref<1x3x4096xf32, #tpu.memory_space<vmem>>) attributes {dimension_semantics = [#tpu.dimension_semantics<parallel>, #tpu.dimension_semantics<parallel>], iteration_bounds = array<i64: 2, 1>, scalar_prefetch = 0 : i64, scratch_operands = 0 : i64, tpu.core_type = #tpu.core_type<tc>, window_params = [{transform_indices = @transform_0, window_bounds = array<i64: 1, 3, 4096>}, {pipeline_mode = #tpu.pipeline_mode<synchronous>, transform_indices = @transform_1, window_bounds = array<i64: 3, 1>}, {pipeline_mode = #tpu.pipeline_mode<synchronous>, transform_indices = @transform_2, window_bounds = array<i64: 3, 1>}, {transform_indices = @transform_3, window_bounds = array<i64: 1, 3, 4096>}]} {
    %c0 = arith.constant 0 : index
    %c0_0 = arith.constant 0 : index
    %c0_1 = arith.constant 0 : index
    %0 = vector.load %arg2[%c0, %c0_0, %c0_1] : memref<1x3x4096xf32, #tpu.memory_space<vmem>>, vector<1x3x4096xf32>
    %1 = vector.shape_cast %0 : vector<1x3x4096xf32> to vector<3x4096xf32>
    %c0_2 = arith.constant 0 : index
    %c0_3 = arith.constant 0 : index
    %2 = vector.load %arg3[%c0_2, %c0_3] : memref<3x1xf32, #tpu.memory_space<vmem>>, vector<3x1xf32>
    %3 = vector.broadcast %2 : vector<3x1xf32> to vector<3x4096xf32>
    %4 = arith.subf %1, %3 : vector<3x4096xf32>
    %c0_4 = arith.constant 0 : index
    %c0_5 = arith.constant 0 : index
    %5 = vector.load %arg4[%c0_4, %c0_5] : memref<3x1xf32, #tpu.memory_space<vmem>>, vector<3x1xf32>
    %6 = vector.broadcast %5 : vector<3x1xf32> to vector<3x4096xf32>
    %7 = arith.mulf %4, %6 : vector<3x4096xf32>
    %c0_6 = arith.constant 0 : index
    %c0_7 = arith.constant 0 : index
    %c0_8 = arith.constant 0 : index
    %8 = vector.load %arg5[%c0_6, %c0_7, %c0_8] : memref<1x3x4096xf32, #tpu.memory_space<vmem>>, vector<1x3x4096xf32>
    %9 = vector.shape_cast %8 : vector<1x3x4096xf32> to vector<3x4096xf32>
    %10 = vector.shape_cast %7 : vector<3x4096xf32> to vector<1x3x4096xf32>
    tpu.vector_store %arg5[%c0_6, %c0_7, %c0_8], %10 {strides = array<i32>} : memref<1x3x4096xf32, #tpu.memory_space<vmem>>, vector<1x3x4096xf32>,
    return
  }
  func.func @transform_0(%arg0: i32, %arg1: i32) -> (i32, i32, i32) {
    %c0_i32 = arith.constant 0 : i32
    %c0_i32_0 = arith.constant 0 : i32
    return %arg0, %c0_i32, %arg1 : i32, i32, i32
  }
  func.func @transform_1(%arg0: i32, %arg1: i32) -> (i32, i32) {
    %c0_i32 = arith.constant 0 : i32
    %c0_i32_0 = arith.constant 0 : i32
    %c0_i32_1 = arith.constant 0 : i32
    return %c0_i32, %c0_i32_0 : i32, i32
  }
  func.func @transform_2(%arg0: i32, %arg1: i32) -> (i32, i32) {
    %c0_i32 = arith.constant 0 : i32
    %c0_i32_0 = arith.constant 0 : i32
    %c0_i32_1 = arith.constant 0 : i32
    return %c0_i32, %c0_i32_0 : i32, i32
  }
  func.func @transform_3(%arg0: i32, %arg1: i32) -> (i32, i32, i32) {
    %c0_i32 = arith.constant 0 : i32
    %c0_i32_0 = arith.constant 0 : i32
    return %arg0, %c0_i32, %arg1 : i32, i32, i32
  }
}

</mosaic_0001>

<llo_original>
// kernel: tpu_custom_call.1
$region0: #{tpu_custom_call.1}
  #allocation0 [shape = 'u32[]', space=smem, size = 0x4, offset = 0x4, fixed_abs, tag = 'smem constant byte address 0x4 - core index']
  #allocation1 [shape = 'u32[72,128]{1,0:T(1,128)}', space=vmem, size = 0x9000, scoped, tag = 'internal scratch']
  %s0 = inlined_call_operand.vmem [shape: f32[2,3,4096], index: 0, kind: input, shape index: {}]
  %s1 = inlined_call_operand.vmem [shape: f32[3,1], index: 1, kind: input, shape index: {}]
  %s2 = inlined_call_operand.vmem [shape: f32[3,1], index: 2, kind: input, shape index: {}]
  %s3 = inlined_call_operand.vmem [shape: f32[2,3,4096], index: 3, kind: output, shape index: {}]
  %s4 = sld [smem:[#allocation0]]
  $region45: #{tpu_custom_call.1} parent=0
    _
  %s6 = ssub.s32 1, %s4
  %s7 = scalar_select 0, %s6, %s4
  loop: start=0, step=1, limit=4
  $region2: #{tpu_custom_call.1} parent=0 // loop_pre_header
    _
  $region3: #{tpu_custom_call.1} parent=0 // loop_header
    %s9 = sphi 0, %s13
    %p10 = scmp.ge.s32.totalorder %s9, 4
    %s16 = sphi 0, %s28
    %s17 = sphi 0, %s24
    %s18 = sphi 0, %s16
    %s19 = sphi 0, %s17
    %s20 = sphi 0, %s18
    %s21 = sphi 0, %s19
    %s33 = sphi 0, %s35
    %s36 = sphi 0, %s33
    %s37 = sphi 0, %s36
    %s53 = sphi 0, %s37
    %s57 = sphi 0, %s57
    %s59 = sphi 0, %s57
    %s60 = sphi 0, %s59
    %s74 = sphi 0, %s60
    %s78 = sphi 0, %s78
    %s80 = sphi 0, %s78
    %s81 = sphi 0, %s80
    %s95 = sphi 0, %s81
    %s103 = sphi 0, %s105
    %s106 = sphi 0, %s103
    %s107 = sphi 0, %s106
    %s123 = sphi 0, %s107
  $region4: #{tpu_custom_call.1} parent=0 // loop_header_branch
    %12 = sbr.rel (%p10) target = $region8
  $region5: #{tpu_custom_call.1} parent=0 // loop_body
    %s14 = ssub.s32 %s9, 1
    %s15 = ssub.s32 %s9, 2
    %s22 = sadd.s32 1, %s17
    %p23 = scmp.ge.s32.totalorder %s22, 1
    %s24 = scalar_select %p23, 0, %s22
    %s25 = sadd.s32 1, %s16
    %s26 = scalar_select %p23, %s25, %s16
    %p27 = scmp.ge.s32.totalorder %s26, 2
    %s28 = scalar_select %p27, 0, %s26
    %s29 = ssub.s32 %s16, %s28
    %s30 = ssub.s32 %s17, %s24
    %s31 = sor.u32 %s29, %s30
    %p32 = scmp.eq.s32.totalorder %s31, 0
    %s34 = sadd.s32 %s33, 1
    %s35 = scalar_select %p32, %s33, %s34
    %p38 = pneg %p32
    %p39 = scmp.eq.s32.totalorder %s9, 1
    %p40 = por %p38, %p39
    %p41 = scmp.ne.s32.totalorder %s33, %s36
    %p42 = scmp.eq.s32.totalorder %s9, 0
    %p43 = por %p41, %p42
    %p44 = scmp.ne.s32.totalorder %s33, %s36
    %p45 = scmp.eq.s32.totalorder %s14, 1
    %p46 = por %p44, %p45
    %p47 = scmp.ne.s32.totalorder %s36, %s37
    %p48 = scmp.eq.s32.totalorder %s14, 0
    %p49 = por %p47, %p48
    %p50 = scmp.ne.s32.totalorder %s36, %s37
    %p51 = scmp.eq.s32.totalorder %s15, 1
    %p52 = por %p50, %p51
    %p54 = scmp.ne.s32.totalorder %s37, %s53
    %p55 = scmp.eq.s32.totalorder %s15, 0
    %p56 = por %p54, %p55
    %s58 = sadd.s32 %s57, 1
    %p61 = scmp.eq.s32.totalorder %s9, 1
    %p62 = scmp.ne.s32.totalorder %s57, %s59
    %p63 = scmp.eq.s32.totalorder %s9, 0
    %p64 = por %p62, %p63
    %p65 = scmp.ne.s32.totalorder %s57, %s59
    %p66 = scmp.eq.s32.totalorder %s14, 1
    %p67 = por %p65, %p66
    %p68 = scmp.ne.s32.totalorder %s59, %s60
    %p69 = scmp.eq.s32.totalorder %s14, 0
    %p70 = por %p68, %p69
    %p71 = scmp.ne.s32.totalorder %s59, %s60
    %p72 = scmp.eq.s32.totalorder %s15, 1
    %p73 = por %p71, %p72
    %p75 = scmp.ne.s32.totalorder %s60, %s74
    %p76 = scmp.eq.s32.totalorder %s15, 0
    %p77 = por %p75, %p76
    %s79 = sadd.s32 %s78, 1
    %p82 = scmp.eq.s32.totalorder %s9, 1
    %p83 = scmp.ne.s32.totalorder %s78, %s80
    %p84 = scmp.eq.s32.totalorder %s9, 0
    %p85 = por %p83, %p84
    %p86 = scmp.ne.s32.totalorder %s78, %s80
    %p87 = scmp.eq.s32.totalorder %s14, 1
    %p88 = por %p86, %p87
    %p89 = scmp.ne.s32.totalorder %s80, %s81
    %p90 = scmp.eq.s32.totalorder %s14, 0
    %p91 = por %p89, %p90
    %p92 = scmp.ne.s32.totalorder %s80, %s81
    %p93 = scmp.eq.s32.totalorder %s15, 1
    %p94 = por %p92, %p93
    %p96 = scmp.ne.s32.totalorder %s81, %s95
    %p97 = scmp.eq.s32.totalorder %s15, 0
    %p98 = por %p96, %p97
    %s99 = ssub.s32 %s16, %s28
    %s100 = ssub.s32 %s17, %s24
    %s101 = sor.u32 %s99, %s100
    %p102 = scmp.eq.s32.totalorder %s101, 0
    %s104 = sadd.s32 %s103, 1
    %s105 = scalar_select %p102, %s103, %s104
    %p108 = pneg %p102
    %p109 = scmp.eq.s32.totalorder %s9, 1
    %p110 = por %p108, %p109
    %p111 = scmp.ne.s32.totalorder %s103, %s106
    %p112 = scmp.eq.s32.totalorder %s9, 0
    %p113 = por %p111, %p112
    %p114 = scmp.ne.s32.totalorder %s103, %s106
    %p115 = scmp.eq.s32.totalorder %s14, 1
    %p116 = por %p114, %p115
    %p117 = scmp.ne.s32.totalorder %s106, %s107
    %p118 = scmp.eq.s32.totalorder %s14, 0
    %p119 = por %p117, %p118
    %p120 = scmp.ne.s32.totalorder %s106, %s107
    %p121 = scmp.eq.s32.totalorder %s15, 1
    %p122 = por %p120, %p121
    %p124 = scmp.ne.s32.totalorder %s107, %s123
    %p125 = scmp.eq.s32.totalorder %s15, 0
    %p126 = por %p124, %p125
    %p127 = scmp.le.s32.totalorder 1, %s9
    %p128 = scmp.lt.s32.totalorder %s9, 3
    %p129 = pnand %p127, %p128
    %p130 = pneg %p129
    // Predicated region
    $region9: #{tpu_custom_call.1} parent=5 // pred_check
      _
    $region10: #{tpu_custom_call.1} parent=5 // pred_check_branch
      %132 = sbr.rel (%p129) target = $region12
    $region11: #{tpu_custom_call.1} parent=5 // pred_region
      %s133 = ssub.s32 %s9, 1
      // Predicated region
      $region13: #{tpu_custom_call.1} parent=11 // pred_check
        %p134 = pneg %p70
      $region14: #{tpu_custom_call.1} parent=11 // pred_check_branch
        %136 = sbr.rel (%p134) target = $region16
      $region15: #{tpu_custom_call.1} parent=11 // pred_region
        _
      $region16: #{tpu_custom_call.1} parent=11 // pred_fallthru
        _
      // Predicated region
      $region17: #{tpu_custom_call.1} parent=11 // pred_check
        %p137 = pneg %p91
      $region18: #{tpu_custom_call.1} parent=11 // pred_check_branch
        %139 = sbr.rel (%p137) target = $region20
      $region19: #{tpu_custom_call.1} parent=11 // pred_region
        _
      $region20: #{tpu_custom_call.1} parent=11 // pred_fallthru
        _
    $region12: #{tpu_custom_call.1} parent=5 // pred_fallthru
      _
    %p140 = scmp.lt.s32.totalorder %s9, 2
    // Predicated region
    $region21: #{tpu_custom_call.1} parent=5 // pred_check
      %p141 = pneg %p140
    $region22: #{tpu_custom_call.1} parent=5 // pred_check_branch
      %143 = sbr.rel (%p141) target = $region24
    $region23: #{tpu_custom_call.1} parent=5 // pred_region
      // Predicated region
      $region25: #{tpu_custom_call.1} parent=23 // pred_check
        %p144 = pneg %p43
      $region26: #{tpu_custom_call.1} parent=23 // pred_check_branch
        %146 = sbr.rel (%p144) target = $region28
      $region27: #{tpu_custom_call.1} parent=23 // pred_region
        %s147 = smul.u32 32, %s17
        %p148 = scmp.lt.s32.totalorder %s16, 1
        %s149 = scalar_select %p148, %s16, 1
        %p150 = scmp.lt.s32.totalorder %s147, 31
        %s151 = scalar_select %p150, %s147, 31
        %s152 = smul.addr %s149, 32
        %s153 = sadd.s32 %s151, %s152
        %s154 = smul.addr %s153, 4
        %s155 = scalar_lea.vmem %s0, %s154
        %s156 = smul.u32 32, %s17
      $region28: #{tpu_custom_call.1} parent=23 // pred_fallthru
        _
    $region24: #{tpu_custom_call.1} parent=5 // pred_fallthru
      _
    %p157 = scmp.le.s32.totalorder 1, %s9
    %p158 = scmp.lt.s32.totalorder %s9, 3
    %p159 = pnand %p157, %p158
    %p160 = pneg %p159
    // Predicated region
    $region29: #{tpu_custom_call.1} parent=5 // pred_check
      _
    $region30: #{tpu_custom_call.1} parent=5 // pred_check_branch
      %162 = sbr.rel (%p159) target = $region32
    $region31: #{tpu_custom_call.1} parent=5 // pred_region
      %s163 = ssub.s32 %s9, 1
      %s164 = smul.u32 32, %s19
      %p165 = scmp.lt.s32.totalorder %s18, 1
      %s166 = scalar_select %p165, %s18, 1
      %p167 = scmp.lt.s32.totalorder %s164, 31
      %s168 = scalar_select %p167, %s164, 31
      %s169 = smul.addr %s166, 32
      %s170 = sadd.s32 %s168, %s169
      %s171 = smul.addr %s170, 4
      %s172 = scalar_lea.vmem %s0, %s171
      %p173 = pneg %p49
      %p174 = pneg %p46
      %p175 = pneg %p70
      %p176 = pneg %p67
      %p177 = pneg %p91
      %p178 = pneg %p88
      %p179 = pneg %p119
      %p180 = pneg %p116
      %s181 = smul.u32 32, %s19
      %p182 = scmp.lt.s32.totalorder %s18, 1
      %s183 = scalar_select %p182, %s18, 1
      %p184 = scmp.lt.s32.totalorder %s181, 31
      %s185 = scalar_select %p184, %s181, 31
      %s186 = smul.addr %s183, 32
      %s187 = sadd.s32 %s185, %s186
      %s188 = smul.addr %s187, 4
      %s189 = scalar_lea.vmem %s3, %s188
      %s190 = smul.u32 32, %s19
      %p191 = scmp.lt.s32.totalorder %s18, 1
      %s192 = scalar_select %p191, %s18, 1
      %p193 = scmp.lt.s32.totalorder %s190, 31
      %s194 = scalar_select %p193, %s190, 31
      %s195 = smul.addr %s192, 32
      %s196 = sadd.s32 %s194, %s195
      %s197 = smul.addr %s196, 4
      %s198 = scalar_lea.vmem %s0, %s197
      %s199 = smul.u32 32, %s19
      %s200 = smul.u32 32, %s19
      %p201 = scmp.lt.s32.totalorder %s18, 1
      %s202 = scalar_select %p201, %s18, 1
      %p203 = scmp.lt.s32.totalorder %s200, 31
      %s204 = scalar_select %p203, %s200, 31
      %s205 = smul.addr %s202, 32
      %s206 = sadd.s32 %s204, %s205
      %s207 = smul.addr %s206, 4
      %s208 = scalar_lea.vmem %s3, %s207
      %s209 = smul.u32 32, %s19
      %v210 = vld [vmem:[%s198] sm:$0x77]
      %v211 = vld [vmem:[%s198 + $0x8] sm:$0x77]
      %v212 = vld [vmem:[%s198 + $0x10] sm:$0x77]
      %v213 = vld [vmem:[%s198 + $0x18] sm:$0x77]
      %v214 = vld [vmem:[%s198 + $0x20] sm:$0x77]
      %v215 = vld [vmem:[%s198 + $0x28] sm:$0x77]
      %v216 = vld [vmem:[%s198 + $0x30] sm:$0x77]
      %v217 = vld [vmem:[%s198 + $0x38] sm:$0x77]
      %v218 = vld [vmem:[%s198 + $0x40] sm:$0x77]
      %v219 = vld [vmem:[%s198 + $0x48] sm:$0x77]
      %v220 = vld [vmem:[%s198 + $0x50] sm:$0x77]
      %v221 = vld [vmem:[%s198 + $0x58] sm:$0x77]
      %v222 = vld [vmem:[%s198 + $0x60] sm:$0x77]
      %v223 = vld [vmem:[%s198 + $0x68] sm:$0x77]
      %v224 = vld [vmem:[%s198 + $0x70] sm:$0x77]
      %v225 = vld [vmem:[%s198 + $0x78] sm:$0x77]
      %v226 = vld [vmem:[%s1] sm:$0x7]
      %228 = vset.pattern.permute.xlu0 0
      %229 = vperm.xlu0 %228, %v226
      %v230 = vpop.permute.xlu0 %229
      %v232 = vunpack.c.l.s4 839922192
      %v233 = vunpack.c.0.s8 %v232
      %v234 = vperm.slane %v230, %v233
      %v236 = vsub.f32 %v210, %v234
      %v237 = vsub.f32 %v211, %v234
      %v238 = vsub.f32 %v212, %v234
      %v239 = vsub.f32 %v213, %v234
      %v240 = vsub.f32 %v214, %v234
      %v241 = vsub.f32 %v215, %v234
      %v242 = vsub.f32 %v216, %v234
      %v243 = vsub.f32 %v217, %v234
      %v244 = vsub.f32 %v218, %v234
      %v245 = vsub.f32 %v219, %v234
      %v246 = vsub.f32 %v220, %v234
      %v247 = vsub.f32 %v221, %v234
      %v248 = vsub.f32 %v222, %v234
      %v249 = vsub.f32 %v223, %v234
      %v250 = vsub.f32 %v224, %v234
      %v251 = vsub.f32 %v225, %v234
      %v252 = vld [vmem:[%s2] sm:$0x7]
      %254 = vset.pattern.permute.xlu0 0
      %255 = vperm.xlu0 %254, %v252
      %v256 = vpop.permute.xlu0 %255
      %v258 = vunpack.c.l.s4 839922192
      %v259 = vunpack.c.0.s8 %v258
      %v260 = vperm.slane %v256, %v259
      %v262 = vmul.f32 %v236, %v260
      %v263 = vmul.f32 %v237, %v260
      %v264 = vmul.f32 %v238, %v260
      %v265 = vmul.f32 %v239, %v260
      %v266 = vmul.f32 %v240, %v260
      %v267 = vmul.f32 %v241, %v260
      %v268 = vmul.f32 %v242, %v260
      %v269 = vmul.f32 %v243, %v260
      %v270 = vmul.f32 %v244, %v260
      %v271 = vmul.f32 %v245, %v260
      %v272 = vmul.f32 %v246, %v260
      %v273 = vmul.f32 %v247, %v260
      %v274 = vmul.f32 %v248, %v260
      %v275 = vmul.f32 %v249, %v260
      %v276 = vmul.f32 %v250, %v260
      %v277 = vmul.f32 %v251, %v260
      %278 = vst [vmem:[%s208] sm:$0x77] %v262
      %279 = vst [vmem:[%s208 + $0x8] sm:$0x77] %v263
      %280 = vst [vmem:[%s208 + $0x10] sm:$0x77] %v264
      %281 = vst [vmem:[%s208 + $0x18] sm:$0x77] %v265
      %282 = vst [vmem:[%s208 + $0x20] sm:$0x77] %v266
      %283 = vst [vmem:[%s208 + $0x28] sm:$0x77] %v267
      %284 = vst [vmem:[%s208 + $0x30] sm:$0x77] %v268
      %285 = vst [vmem:[%s208 + $0x38] sm:$0x77] %v269
      %286 = vst [vmem:[%s208 + $0x40] sm:$0x77] %v270
      %287 = vst [vmem:[%s208 + $0x48] sm:$0x77] %v271
      %288 = vst [vmem:[%s208 + $0x50] sm:$0x77] %v272
      %289 = vst [vmem:[%s208 + $0x58] sm:$0x77] %v273
      %290 = vst [vmem:[%s208 + $0x60] sm:$0x77] %v274
      %291 = vst [vmem:[%s208 + $0x68] sm:$0x77] %v275
      %292 = vst [vmem:[%s208 + $0x70] sm:$0x77] %v276
      %293 = vst [vmem:[%s208 + $0x78] sm:$0x77] %v277
      %s294 = smul.u32 32, %s19
      %p295 = scmp.lt.s32.totalorder %s18, 1
      %s296 = scalar_select %p295, %s18, 1
      %p297 = scmp.lt.s32.totalorder %s294, 31
      %s298 = scalar_select %p297, %s294, 31
      %s299 = smul.addr %s296, 32
      %s300 = sadd.s32 %s298, %s299
      %s301 = smul.addr %s300, 4
      %s302 = scalar_lea.vmem %s3, %s301
      // Predicated region
      $region33: #{tpu_custom_call.1} parent=31 // pred_check
        %p303 = pneg %p116
      $region34: #{tpu_custom_call.1} parent=31 // pred_check_branch
        %305 = sbr.rel (%p303) target = $region36
      $region35: #{tpu_custom_call.1} parent=31 // pred_region
        %s306 = smul.u32 32, %s19
      $region36: #{tpu_custom_call.1} parent=31 // pred_fallthru
        _
    $region32: #{tpu_custom_call.1} parent=5 // pred_fallthru
      _
    %p307 = scmp.le.s32.totalorder 2, %s9
    // Predicated region
    $region37: #{tpu_custom_call.1} parent=5 // pred_check
      %p308 = pneg %p307
    $region38: #{tpu_custom_call.1} parent=5 // pred_check_branch
      %310 = sbr.rel (%p308) target = $region40
    $region39: #{tpu_custom_call.1} parent=5 // pred_region
      %s311 = ssub.s32 %s9, 2
      // Predicated region
      $region41: #{tpu_custom_call.1} parent=39 // pred_check
        %p312 = pneg %p122
      $region42: #{tpu_custom_call.1} parent=39 // pred_check_branch
        %314 = sbr.rel (%p312) target = $region44
      $region43: #{tpu_custom_call.1} parent=39 // pred_region
        %s315 = smul.u32 32, %s21
        %p316 = scmp.lt.s32.totalorder %s20, 1
        %s317 = scalar_select %p316, %s20, 1
        %p318 = scmp.lt.s32.totalorder %s315, 31
        %s319 = scalar_select %p318, %s315, 31
        %s320 = smul.addr %s317, 32
        %s321 = sadd.s32 %s319, %s320
        %s322 = smul.addr %s321, 4
        %s323 = scalar_lea.vmem %s3, %s322
      $region44: #{tpu_custom_call.1} parent=39 // pred_fallthru
        _
    $region40: #{tpu_custom_call.1} parent=5 // pred_fallthru
      _
  $region6: #{tpu_custom_call.1} parent=0 // loop_footer
    %s13 = sadd.s32 1, %s9
  $region7: #{tpu_custom_call.1} parent=0 // loop_footer_branch
    %8 = sbr.rel target = $region3
  $region8: #{tpu_custom_call.1} parent=0 // loop_exit
    _

</llo_original>
